<compile_context>
chip_gen: v5e
topology: v5e:2x2
jax: 0.10.0
libtpu: 0.0.40
codegen_flags: <defaults>
</compile_context>

<pallas_src>
import numpy as np
import jax
import jax.numpy as jnp
from jax.experimental import pallas as pl
from jax.experimental.pallas import tpu as pltpu

# ---- hyper-params (ModelHyperParams equivalent, small/deterministic) ----
BLOCK_SIZE = 16       # T
N_EMBD = 32           # C
N_LAYERS = 3          # wavenet_layers
RESHAPE_FACTOR = 2    # rf
LN_EPS = 1e-5

PAD_N = 128           # lane-padded Linear output width (multiple of 128)


# ----------------------------- parameters -----------------------------------
def init_layer_params(key, n_embd, r):
    """Raw params of one WaveNetLayer: LayerNorm(fan_in) + Linear(fan_in, n_embd)."""
    fan_in = n_embd * r
    kw, kb = jax.random.split(key)
    bound = 1.0 / float(np.sqrt(fan_in))
    gamma = jnp.ones((fan_in,), jnp.float32)
    beta = jnp.zeros((fan_in,), jnp.float32)
    # Linear weight stored transposed: (fan_in, n_embd) so the kernel does x @ W.
    w = jax.random.uniform(kw, (fan_in, n_embd), jnp.float32, -bound, bound)
    b = jax.random.uniform(kb, (n_embd,), jnp.float32, -bound, bound)
    return (gamma, beta, w, b)


def build_wavenet_params(key, block_size, n_embd, n_layers, rf):
    assert block_size // rf ** n_layers > 0, \
        "reshape_factor ** n_layers shouldn't be greater than block_size"
    pool = block_size // rf ** n_layers
    factors = [rf] * n_layers + ([pool] if pool > 1 else [])
    keys = jax.random.split(key, len(factors))
    layers = [init_layer_params(keys[i], n_embd, factors[i])
              for i in range(len(factors))]
    return layers, tuple(factors)


def fold_layer_params(raw, n_embd):
    """Fold LN affine into the Linear and zero-pad the output dim to PAD_N lanes."""
    gamma, beta, w, b = raw                       # w: (fan_in, n_embd)
    fan_in = w.shape[0]
    w_fold = gamma[:, None] * w                   # exact f32 fold of the LN scale
    b_fold = beta @ w + b                         # exact f32 fold of the LN shift
    w_pad = jnp.zeros((fan_in, PAD_N), jnp.float32).at[:, :n_embd].set(w_fold)
    b_pad = jnp.zeros((1, PAD_N), jnp.float32).at[0, :n_embd].set(b_fold)
    return w_pad.astype(jnp.bfloat16), b_pad      # bf16 weights into the MXU


# ------------------------------ fused kernel ---------------------------------
def _make_fused_kernel(layer_rows, factors, n_embd, eps):
    """layer_rows[l]: LN/Linear rows of layer l per grid block (static ints)."""
    n_layers = len(factors)

    def ln_linear_relu(xin, w_ref, b_ref):
        # xin: (rows, fan_in) f32.  gamma/beta already folded into w/b.
        fan_in = xin.shape[-1]
        inv_fan = 1.0 / float(fan_in)
        s1 = jnp.sum(xin, axis=-1, keepdims=True)
        s2 = jnp.sum(xin * xin, axis=-1, keepdims=True)
        mean = s1 * inv_fan
        var = s2 * inv_fan - mean * mean            # one-pass biased var (torch LN)
        inv = jax.lax.rsqrt(var + eps)
        xn = ((xin - mean) * inv).astype(jnp.bfloat16)      # bf16 into the MXU
        y = jnp.dot(xn, w_ref[...], preferred_element_type=jnp.float32)
        return jnp.maximum(y + b_ref[...], 0.0)             # f32 bias + ReLU, (rows, PAD_N)

    def kernel(*refs):
        x_ref = refs[0]
        w_refs = refs[1:1 + 2 * n_layers:2]
        b_refs = refs[2:2 + 2 * n_layers:2]
        o_ref = refs[1 + 2 * n_layers]
        act = (refs[2 + 2 * n_layers], refs[3 + 2 * n_layers])   # ping-pong scratch

        # ---- layer 0: reads the (naturally ordered) input tile directly ----
        y = ln_linear_relu(x_ref[...], w_refs[0], b_refs[0])
        if n_layers == 1:
            o_ref[...] = y[:, :n_embd]
            return
        act[0][0:layer_rows[0], :] = y              # lane-dense 128-wide store

        # ---- layers 1.. : consume the VMEM-resident previous activations ----
        for l in range(1, n_layers):
            r = factors[l]
            rows = layer_rows[l]
            prev = act[(l - 1) % 2]
            # PyTorch view(B, T/r, C*r): input row t' = concat_k(prev_out[r*t'+k]).
            # Sublane-strided reads compact each residue class; a lane concat
            # rebuilds the (rows, fan_in) LayerNorm input in natural row order.
            parts = [prev[pl.ds(k, rows, stride=r), :][:, :n_embd] for k in range(r)]
            xin = parts[0] if r == 1 else jnp.concatenate(parts, axis=-1)
            y = ln_linear_relu(xin, w_refs[l], b_refs[l])
            if l == n_layers - 1:
                o_ref[...] = y[:, :n_embd]
            else:
                act[l % 2][0:rows, :] = y

    return kernel


def make_wavenet_forward(batch, block_size, n_embd, factors, batch_tile=8):
    """Builds a jitted forward(x, folded_params) using one fused, gridded pallas_call."""
    factors = tuple(int(r) for r in factors)
    assert batch % batch_tile == 0, "batch must be divisible by batch_tile"

    # Rows of LayerNorm/Linear input per layer, per grid block (batch_tile elems).
    layer_rows = []
    t = block_size
    for r in factors:
        assert t % r == 0, "time dim must be divisible by each reshape factor"
        t //= r
        layer_rows.append(batch_tile * t)
    layer_rows = tuple(layer_rows)
    t_final = t
    n_layers = len(factors)
    fan0 = n_embd * factors[0]
    rows0, rows_last = layer_rows[0], layer_rows[-1]

    assert rows0 % 8 == 0, "batch_tile * block_size / rf must be a sublane multiple"
    assert rows_last % 8 == 0 or rows_last == batch * t_final
    for r in factors:
        assert n_embd * r <= PAD_N, "fan_in must fit in the 128-lane padded width"

    kernel = _make_fused_kernel(layer_rows, factors, n_embd, LN_EPS)

    in_specs = [pl.BlockSpec((rows0, fan0), lambda g: (g, 0))]          # x tile
    for l in range(n_layers):
        k_dim = n_embd * factors[l]
        # Constant index_map -> weights/bias stay VMEM-resident across the grid.
        in_specs.append(pl.BlockSpec((k_dim, PAD_N), lambda g: (0, 0)))  # W_l
        in_specs.append(pl.BlockSpec((1, PAD_N), lambda g: (0, 0)))      # b_l
    out_specs = pl.BlockSpec((rows_last, n_embd), lambda g: (g, 0))

    fused_call = pl.pallas_call(
        kernel,
        grid=(batch // batch_tile,),
        out_shape=jax.ShapeDtypeStruct((batch * t_final, n_embd), jnp.float32),
        in_specs=in_specs,
        out_specs=out_specs,
        scratch_shapes=[pltpu.VMEM((rows0, PAD_N), jnp.float32),
                        pltpu.VMEM((rows0, PAD_N), jnp.float32)],
        compiler_params=pltpu.CompilerParams(
            dimension_semantics=("parallel",),
            vmem_limit_bytes=32 * 1024 * 1024),
    )

    @jax.jit
    def forward(x, folded_params):
        # Contiguous (metadata-only) reshape == the PyTorch x.view of layer 0.
        x2 = x.reshape((batch * block_size) // factors[0], fan0)
        flat = []
        for w, b in folded_params:
            flat.append(w)
            flat.append(b)
        out2 = fused_call(x2, *flat)
        return out2.reshape(batch, t_final, n_embd)

    return forward


# ---------------------- pure-JAX reference (f32) -----------------------------
def ref_layer(x, raw, r):
    gamma, beta, w, b = raw
    B, T, C = x.shape
    xr = x.reshape(B, T // r, C * r)
    mean = jnp.mean(xr, axis=-1, keepdims=True)
    var = jnp.mean((xr - mean) ** 2, axis=-1, keepdims=True)   # biased, like torch LN
    xn = (xr - mean) / jnp.sqrt(var + LN_EPS) * gamma + beta
    y = jnp.matmul(xn, w, precision=jax.lax.Precision.HIGHEST) + b
    return jnp.maximum(y, 0.0)


def ref_forward(x, raw_layers, factors):
    for raw, r in zip(raw_layers, factors):
        x = ref_layer(x, raw, r)
    return x


# ---------------------------------- main --------------------------------------
if __name__ == "__main__":
    key = jax.random.PRNGKey(0)
    kx, kp = jax.random.split(key)

    # Small but grid-friendly batch: 2 grid steps of 8 batch elements each.
    B = 16
    x = jax.random.normal(kx, (B, BLOCK_SIZE, N_EMBD), jnp.float32)

    raw_layers, factors = build_wavenet_params(
        kp, BLOCK_SIZE, N_EMBD, N_LAYERS, RESHAPE_FACTOR)
    folded = tuple(fold_layer_params(p, N_EMBD) for p in raw_layers)

    forward = make_wavenet_forward(B, BLOCK_SIZE, N_EMBD, factors, batch_tile=8)
    out = jax.block_until_ready(forward(x, folded))

    ref = ref_forward(x, raw_layers, factors)
    t_final = BLOCK_SIZE // int(np.prod(factors))
    assert out.shape == (B, t_final, N_EMBD), out.shape
    # bf16 MXU inputs with f32 accumulation vs. a full-f32 (HIGHEST) reference.
    max_err = float(jnp.max(jnp.abs(out - ref)))
    assert jnp.allclose(out, ref, atol=3e-2, rtol=3e-2), \
        f"mismatch vs reference: max abs err {max_err}"

    print("KERNEL_OK")
</pallas_src>

<mosaic_0001>
module attributes {stable_mosaic.version = 11 : i64} {
  func.func @kernel(%arg0: i32, %arg1: memref<64x64xf32, #tpu.memory_space<vmem>>, %arg2: memref<64x128xbf16, #tpu.memory_space<vmem>>, %arg3: memref<1x128xf32, #tpu.memory_space<vmem>>, %arg4: memref<64x128xbf16, #tpu.memory_space<vmem>>, %arg5: memref<1x128xf32, #tpu.memory_space<vmem>>, %arg6: memref<64x128xbf16, #tpu.memory_space<vmem>>, %arg7: memref<1x128xf32, #tpu.memory_space<vmem>>, %arg8: memref<64x128xbf16, #tpu.memory_space<vmem>>, %arg9: memref<1x128xf32, #tpu.memory_space<vmem>>, %arg10: memref<8x32xf32, #tpu.memory_space<vmem>>, %arg11: memref<64x128xf32, #tpu.memory_space<vmem>>, %arg12: memref<64x128xf32, #tpu.memory_space<vmem>>) attributes {dimension_semantics = [#tpu.dimension_semantics<parallel>], iteration_bounds = array<i64: 2>, scalar_prefetch = 0 : i64, scratch_operands = 2 : i64, tpu.core_type = #tpu.core_type<tc>, window_params = [{transform_indices = @transform_0, window_bounds = array<i64: 64, 64>}, {pipeline_mode = #tpu.pipeline_mode<synchronous>, transform_indices = @transform_1, window_bounds = array<i64: 64, 128>}, {pipeline_mode = #tpu.pipeline_mode<synchronous>, transform_indices = @transform_2, window_bounds = array<i64: 1, 128>}, {pipeline_mode = #tpu.pipeline_mode<synchronous>, transform_indices = @transform_3, window_bounds = array<i64: 64, 128>}, {pipeline_mode = #tpu.pipeline_mode<synchronous>, transform_indices = @transform_4, window_bounds = array<i64: 1, 128>}, {pipeline_mode = #tpu.pipeline_mode<synchronous>, transform_indices = @transform_5, window_bounds = array<i64: 64, 128>}, {pipeline_mode = #tpu.pipeline_mode<synchronous>, transform_indices = @transform_6, window_bounds = array<i64: 1, 128>}, {pipeline_mode = #tpu.pipeline_mode<synchronous>, transform_indices = @transform_7, window_bounds = array<i64: 64, 128>}, {pipeline_mode = #tpu.pipeline_mode<synchronous>, transform_indices = @transform_8, window_bounds = array<i64: 1, 128>}, {transform_indices = @transform_9, window_bounds = array<i64: 8, 32>}]} {
    %c0 = arith.constant 0 : index
    %c0_0 = arith.constant 0 : index
    %0 = vector.load %arg1[%c0, %c0_0] : memref<64x64xf32, #tpu.memory_space<vmem>>, vector<64x64xf32>
    %cst = arith.constant dense<0.000000e+00> : vector<64xf32>
    %1 = vector.multi_reduction <add>, %0, %cst [1] : vector<64x64xf32> to vector<64xf32>
    %2 = vector.shape_cast %1 : vector<64xf32> to vector<64x1xf32>
    %3 = arith.mulf %0, %0 : vector<64x64xf32>
    %cst_1 = arith.constant dense<0.000000e+00> : vector<64xf32>
    %4 = vector.multi_reduction <add>, %3, %cst_1 [1] : vector<64x64xf32> to vector<64xf32>
    %5 = vector.shape_cast %4 : vector<64xf32> to vector<64x1xf32>
    %cst_2 = arith.constant 1.562500e-02 : f32
    %6 = vector.broadcast %cst_2 : f32 to vector<64x1xf32>
    %7 = arith.mulf %2, %6 : vector<64x1xf32>
    %cst_3 = arith.constant 1.562500e-02 : f32
    %8 = vector.broadcast %cst_3 : f32 to vector<64x1xf32>
    %9 = arith.mulf %5, %8 : vector<64x1xf32>
    %10 = arith.mulf %7, %7 : vector<64x1xf32>
    %11 = arith.subf %9, %10 : vector<64x1xf32>
    %cst_4 = arith.constant 9.99999974E-6 : f32
    %12 = vector.broadcast %cst_4 : f32 to vector<64x1xf32>
    %13 = arith.addf %11, %12 : vector<64x1xf32>
    %14 = math.rsqrt %13 : vector<64x1xf32>
    %15 = vector.broadcast %7 : vector<64x1xf32> to vector<64x64xf32>
    %16 = arith.subf %0, %15 : vector<64x64xf32>
    %17 = vector.broadcast %14 : vector<64x1xf32> to vector<64x64xf32>
    %18 = arith.mulf %16, %17 : vector<64x64xf32>
    %19 = arith.truncf %18 : vector<64x64xf32> to vector<64x64xbf16>
    %c0_5 = arith.constant 0 : index
    %c0_6 = arith.constant 0 : index
    %20 = vector.load %arg2[%c0_5, %c0_6] : memref<64x128xbf16, #tpu.memory_space<vmem>>, vector<64x128xbf16>
    %cst_7 = arith.constant dense<0.000000e+00> : vector<64x128xf32>
    %21 = tpu.matmul %19, %20, %cst_7 {dimension_numbers = #tpu.dot_dimension_numbers<[1], [0], [0], [1], [0, 0, 1, 1], [], []>} : vector<64x64xbf16>, vector<64x128xbf16>, vector<64x128xf32> -> vector<64x128xf32>
    %c0_8 = arith.constant 0 : index
    %c0_9 = arith.constant 0 : index
    %22 = vector.load %arg3[%c0_8, %c0_9] : memref<1x128xf32, #tpu.memory_space<vmem>>, vector<1x128xf32>
    %23 = vector.broadcast %22 : vector<1x128xf32> to vector<64x128xf32>
    %24 = arith.addf %21, %23 : vector<64x128xf32>
    %cst_10 = arith.constant 0.000000e+00 : f32
    %25 = vector.broadcast %cst_10 : f32 to vector<64x128xf32>
    %26 = arith.maximumf %24, %25 : vector<64x128xf32>
    %c0_11 = arith.constant 0 : index
    %c0_12 = arith.constant 0 : index
    %27 = vector.load %arg11[%c0_11, %c0_12] : memref<64x128xf32, #tpu.memory_space<vmem>>, vector<64x128xf32>
    tpu.vector_store %arg11[%c0_11, %c0_12], %26 {strides = array<i32>} : memref<64x128xf32, #tpu.memory_space<vmem>>, vector<64x128xf32>,
    %c0_13 = arith.constant 0 : index
    %c0_14 = arith.constant 0 : index
    %28 = tpu.strided_load %arg11[%c0_13, %c0_14] {strides = array<i32: 2, 1>} : memref<64x128xf32, #tpu.memory_space<vmem>>, vector<32x128xf32>
    %29 = vector.extract_strided_slice %28 {offsets = [0, 0], sizes = [32, 32], strides = [1, 1]} : vector<32x128xf32> to vector<32x32xf32>
    %c1 = arith.constant 1 : index
    %c0_15 = arith.constant 0 : index
    %30 = tpu.strided_load %arg11[%c1, %c0_15] {strides = array<i32: 2, 1>} : memref<64x128xf32, #tpu.memory_space<vmem>>, vector<32x128xf32>
    %31 = vector.extract_strided_slice %30 {offsets = [0, 0], sizes = [32, 32], strides = [1, 1]} : vector<32x128xf32> to vector<32x32xf32>
    %32 = tpu.concatenate %29, %31 in 1 : vector<32x32xf32>, vector<32x32xf32> -> vector<32x64xf32>
    %cst_16 = arith.constant dense<0.000000e+00> : vector<32xf32>
    %33 = vector.multi_reduction <add>, %32, %cst_16 [1] : vector<32x64xf32> to vector<32xf32>
    %34 = vector.shape_cast %33 : vector<32xf32> to vector<32x1xf32>
    %35 = arith.mulf %32, %32 : vector<32x64xf32>
    %cst_17 = arith.constant dense<0.000000e+00> : vector<32xf32>
    %36 = vector.multi_reduction <add>, %35, %cst_17 [1] : vector<32x64xf32> to vector<32xf32>
    %37 = vector.shape_cast %36 : vector<32xf32> to vector<32x1xf32>
    %cst_18 = arith.constant 1.562500e-02 : f32
    %38 = vector.broadcast %cst_18 : f32 to vector<32x1xf32>
    %39 = arith.mulf %34, %38 : vector<32x1xf32>
    %cst_19 = arith.constant 1.562500e-02 : f32
    %40 = vector.broadcast %cst_19 : f32 to vector<32x1xf32>
    %41 = arith.mulf %37, %40 : vector<32x1xf32>
    %42 = arith.mulf %39, %39 : vector<32x1xf32>
    %43 = arith.subf %41, %42 : vector<32x1xf32>
    %cst_20 = arith.constant 9.99999974E-6 : f32
    %44 = vector.broadcast %cst_20 : f32 to vector<32x1xf32>
    %45 = arith.addf %43, %44 : vector<32x1xf32>
    %46 = math.rsqrt %45 : vector<32x1xf32>
    %47 = vector.broadcast %39 : vector<32x1xf32> to vector<32x64xf32>
    %48 = arith.subf %32, %47 : vector<32x64xf32>
    %49 = vector.broadcast %46 : vector<32x1xf32> to vector<32x64xf32>
    %50 = arith.mulf %48, %49 : vector<32x64xf32>
    %51 = arith.truncf %50 : vector<32x64xf32> to vector<32x64xbf16>
    %c0_21 = arith.constant 0 : index
    %c0_22 = arith.constant 0 : index
    %52 = vector.load %arg4[%c0_21, %c0_22] : memref<64x128xbf16, #tpu.memory_space<vmem>>, vector<64x128xbf16>
    %cst_23 = arith.constant dense<0.000000e+00> : vector<32x128xf32>
    %53 = tpu.matmul %51, %52, %cst_23 {dimension_numbers = #tpu.dot_dimension_numbers<[1], [0], [0], [1], [0, 0, 1, 1], [], []>} : vector<32x64xbf16>, vector<64x128xbf16>, vector<32x128xf32> -> vector<32x128xf32>
    %c0_24 = arith.constant 0 : index
    %c0_25 = arith.constant 0 : index
    %54 = vector.load %arg5[%c0_24, %c0_25] : memref<1x128xf32, #tpu.memory_space<vmem>>, vector<1x128xf32>
    %55 = vector.broadcast %54 : vector<1x128xf32> to vector<32x128xf32>
    %56 = arith.addf %53, %55 : vector<32x128xf32>
    %cst_26 = arith.constant 0.000000e+00 : f32
    %57 = vector.broadcast %cst_26 : f32 to vector<32x128xf32>
    %58 = arith.maximumf %56, %57 : vector<32x128xf32>
    %c0_27 = arith.constant 0 : index
    %c0_28 = arith.constant 0 : index
    %59 = vector.load %arg12[%c0_27, %c0_28] : memref<64x128xf32, #tpu.memory_space<vmem>>, vector<32x128xf32>
    tpu.vector_store %arg12[%c0_27, %c0_28], %58 {strides = array<i32>} : memref<64x128xf32, #tpu.memory_space<vmem>>, vector<32x128xf32>,
    %c0_29 = arith.constant 0 : index
    %c0_30 = arith.constant 0 : index
    %60 = tpu.strided_load %arg12[%c0_29, %c0_30] {strides = array<i32: 2, 1>} : memref<64x128xf32, #tpu.memory_space<vmem>>, vector<16x128xf32>
    %61 = vector.extract_strided_slice %60 {offsets = [0, 0], sizes = [16, 32], strides = [1, 1]} : vector<16x128xf32> to vector<16x32xf32>
    %c1_31 = arith.constant 1 : index
    %c0_32 = arith.constant 0 : index
    %62 = tpu.strided_load %arg12[%c1_31, %c0_32] {strides = array<i32: 2, 1>} : memref<64x128xf32, #tpu.memory_space<vmem>>, vector<16x128xf32>
    %63 = vector.extract_strided_slice %62 {offsets = [0, 0], sizes = [16, 32], strides = [1, 1]} : vector<16x128xf32> to vector<16x32xf32>
    %64 = tpu.concatenate %61, %63 in 1 : vector<16x32xf32>, vector<16x32xf32> -> vector<16x64xf32>
    %cst_33 = arith.constant dense<0.000000e+00> : vector<16xf32>
    %65 = vector.multi_reduction <add>, %64, %cst_33 [1] : vector<16x64xf32> to vector<16xf32>
    %66 = vector.shape_cast %65 : vector<16xf32> to vector<16x1xf32>
    %67 = arith.mulf %64, %64 : vector<16x64xf32>
    %cst_34 = arith.constant dense<0.000000e+00> : vector<16xf32>
    %68 = vector.multi_reduction <add>, %67, %cst_34 [1] : vector<16x64xf32> to vector<16xf32>
    %69 = vector.shape_cast %68 : vector<16xf32> to vector<16x1xf32>
    %cst_35 = arith.constant 1.562500e-02 : f32
    %70 = vector.broadcast %cst_35 : f32 to vector<16x1xf32>
    %71 = arith.mulf %66, %70 : vector<16x1xf32>
    %cst_36 = arith.constant 1.562500e-02 : f32
    %72 = vector.broadcast %cst_36 : f32 to vector<16x1xf32>
    %73 = arith.mulf %69, %72 : vector<16x1xf32>
    %74 = arith.mulf %71, %71 : vector<16x1xf32>
    %75 = arith.subf %73, %74 : vector<16x1xf32>
    %cst_37 = arith.constant 9.99999974E-6 : f32
    %76 = vector.broadcast %cst_37 : f32 to vector<16x1xf32>
    %77 = arith.addf %75, %76 : vector<16x1xf32>
    %78 = math.rsqrt %77 : vector<16x1xf32>
    %79 = vector.broadcast %71 : vector<16x1xf32> to vector<16x64xf32>
    %80 = arith.subf %64, %79 : vector<16x64xf32>
    %81 = vector.broadcast %78 : vector<16x1xf32> to vector<16x64xf32>
    %82 = arith.mulf %80, %81 : vector<16x64xf32>
    %83 = arith.truncf %82 : vector<16x64xf32> to vector<16x64xbf16>
    %c0_38 = arith.constant 0 : index
    %c0_39 = arith.constant 0 : index
    %84 = vector.load %arg6[%c0_38, %c0_39] : memref<64x128xbf16, #tpu.memory_space<vmem>>, vector<64x128xbf16>
    %cst_40 = arith.constant dense<0.000000e+00> : vector<16x128xf32>
    %85 = tpu.matmul %83, %84, %cst_40 {dimension_numbers = #tpu.dot_dimension_numbers<[1], [0], [0], [1], [0, 0, 1, 1], [], []>} : vector<16x64xbf16>, vector<64x128xbf16>, vector<16x128xf32> -> vector<16x128xf32>
    %c0_41 = arith.constant 0 : index
    %c0_42 = arith.constant 0 : index
    %86 = vector.load %arg7[%c0_41, %c0_42] : memref<1x128xf32, #tpu.memory_space<vmem>>, vector<1x128xf32>
    %87 = vector.broadcast %86 : vector<1x128xf32> to vector<16x128xf32>
    %88 = arith.addf %85, %87 : vector<16x128xf32>
    %cst_43 = arith.constant 0.000000e+00 : f32
    %89 = vector.broadcast %cst_43 : f32 to vector<16x128xf32>
    %90 = arith.maximumf %88, %89 : vector<16x128xf32>
    %c0_44 = arith.constant 0 : index
    %c0_45 = arith.constant 0 : index
    %91 = vector.load %arg11[%c0_44, %c0_45] : memref<64x128xf32, #tpu.memory_space<vmem>>, vector<16x128xf32>
    tpu.vector_store %arg11[%c0_44, %c0_45], %90 {strides = array<i32>} : memref<64x128xf32, #tpu.memory_space<vmem>>, vector<16x128xf32>,
    %c0_46 = arith.constant 0 : index
    %c0_47 = arith.constant 0 : index
    %92 = tpu.strided_load %arg11[%c0_46, %c0_47] {strides = array<i32: 2, 1>} : memref<64x128xf32, #tpu.memory_space<vmem>>, vector<8x128xf32>
    %93 = vector.extract_strided_slice %92 {offsets = [0, 0], sizes = [8, 32], strides = [1, 1]} : vector<8x128xf32> to vector<8x32xf32>
    %c1_48 = arith.constant 1 : index
    %c0_49 = arith.constant 0 : index
    %94 = tpu.strided_load %arg11[%c1_48, %c0_49] {strides = array<i32: 2, 1>} : memref<64x128xf32, #tpu.memory_space<vmem>>, vector<8x128xf32>
    %95 = vector.extract_strided_slice %94 {offsets = [0, 0], sizes = [8, 32], strides = [1, 1]} : vector<8x128xf32> to vector<8x32xf32>
    %96 = tpu.concatenate %93, %95 in 1 : vector<8x32xf32>, vector<8x32xf32> -> vector<8x64xf32>
    %cst_50 = arith.constant dense<0.000000e+00> : vector<8xf32>
    %97 = vector.multi_reduction <add>, %96, %cst_50 [1] : vector<8x64xf32> to vector<8xf32>
    %98 = vector.shape_cast %97 : vector<8xf32> to vector<8x1xf32>
    %99 = arith.mulf %96, %96 : vector<8x64xf32>
    %cst_51 = arith.constant dense<0.000000e+00> : vector<8xf32>
    %100 = vector.multi_reduction <add>, %99, %cst_51 [1] : vector<8x64xf32> to vector<8xf32>
    %101 = vector.shape_cast %100 : vector<8xf32> to vector<8x1xf32>
    %cst_52 = arith.constant 1.562500e-02 : f32
    %102 = vector.broadcast %cst_52 : f32 to vector<8x1xf32>
    %103 = arith.mulf %98, %102 : vector<8x1xf32>
    %cst_53 = arith.constant 1.562500e-02 : f32
    %104 = vector.broadcast %cst_53 : f32 to vector<8x1xf32>
    %105 = arith.mulf %101, %104 : vector<8x1xf32>
    %106 = arith.mulf %103, %103 : vector<8x1xf32>
    %107 = arith.subf %105, %106 : vector<8x1xf32>
    %cst_54 = arith.constant 9.99999974E-6 : f32
    %108 = vector.broadcast %cst_54 : f32 to vector<8x1xf32>
    %109 = arith.addf %107, %108 : vector<8x1xf32>
    %110 = math.rsqrt %109 : vector<8x1xf32>
    %111 = vector.broadcast %103 : vector<8x1xf32> to vector<8x64xf32>
    %112 = arith.subf %96, %111 : vector<8x64xf32>
    %113 = vector.broadcast %110 : vector<8x1xf32> to vector<8x64xf32>
    %114 = arith.mulf %112, %113 : vector<8x64xf32>
    %115 = arith.truncf %114 : vector<8x64xf32> to vector<8x64xbf16>
    %c0_55 = arith.constant 0 : index
    %c0_56 = arith.constant 0 : index
    %116 = vector.load %arg8[%c0_55, %c0_56] : memref<64x128xbf16, #tpu.memory_space<vmem>>, vector<64x128xbf16>
    %cst_57 = arith.constant dense<0.000000e+00> : vector<8x128xf32>
    %117 = tpu.matmul %115, %116, %cst_57 {dimension_numbers = #tpu.dot_dimension_numbers<[1], [0], [0], [1], [0, 0, 1, 1], [], []>} : vector<8x64xbf16>, vector<64x128xbf16>, vector<8x128xf32> -> vector<8x128xf32>
    %c0_58 = arith.constant 0 : index
    %c0_59 = arith.constant 0 : index
    %118 = vector.load %arg9[%c0_58, %c0_59] : memref<1x128xf32, #tpu.memory_space<vmem>>, vector<1x128xf32>
    %119 = vector.broadcast %118 : vector<1x128xf32> to vector<8x128xf32>
    %120 = arith.addf %117, %119 : vector<8x128xf32>
    %cst_60 = arith.constant 0.000000e+00 : f32
    %121 = vector.broadcast %cst_60 : f32 to vector<8x128xf32>
    %122 = arith.maximumf %120, %121 : vector<8x128xf32>
    %123 = vector.extract_strided_slice %122 {offsets = [0, 0], sizes = [8, 32], strides = [1, 1]} : vector<8x128xf32> to vector<8x32xf32>
    %c0_61 = arith.constant 0 : index
    %c0_62 = arith.constant 0 : index
    %124 = vector.load %arg10[%c0_61, %c0_62] : memref<8x32xf32, #tpu.memory_space<vmem>>, vector<8x32xf32>
    tpu.vector_store %arg10[%c0_61, %c0_62], %123 {strides = array<i32>} : memref<8x32xf32, #tpu.memory_space<vmem>>, vector<8x32xf32>,
    return
  }
  func.func @transform_0(%arg0: i32) -> (i32, i32) {
    %c0_i32 = arith.constant 0 : i32
    %c0_i32_0 = arith.constant 0 : i32
    return %arg0, %c0_i32 : i32, i32
  }
  func.func @transform_1(%arg0: i32) -> (i32, i32) {
    %c0_i32 = arith.constant 0 : i32
    %c0_i32_0 = arith.constant 0 : i32
    %c0_i32_1 = arith.constant 0 : i32
    return %c0_i32, %c0_i32_0 : i32, i32
  }
  func.func @transform_2(%arg0: i32) -> (i32, i32) {
    %c0_i32 = arith.constant 0 : i32
    %c0_i32_0 = arith.constant 0 : i32
    %c0_i32_1 = arith.constant 0 : i32
    return %c0_i32, %c0_i32_0 : i32, i32
  }
  func.func @transform_3(%arg0: i32) -> (i32, i32) {
    %c0_i32 = arith.constant 0 : i32
    %c0_i32_0 = arith.constant 0 : i32
    %c0_i32_1 = arith.constant 0 : i32
    return %c0_i32, %c0_i32_0 : i32, i32
  }
  func.func @transform_4(%arg0: i32) -> (i32, i32) {
    %c0_i32 = arith.constant 0 : i32
    %c0_i32_0 = arith.constant 0 : i32
    %c0_i32_1 = arith.constant 0 : i32
    return %c0_i32, %c0_i32_0 : i32, i32
  }
  func.func @transform_5(%arg0: i32) -> (i32, i32) {
    %c0_i32 = arith.constant 0 : i32
    %c0_i32_0 = arith.constant 0 : i32
    %c0_i32_1 = arith.constant 0 : i32
    return %c0_i32, %c0_i32_0 : i32, i32
  }
  func.func @transform_6(%arg0: i32) -> (i32, i32) {
    %c0_i32 = arith.constant 0 : i32
    %c0_i32_0 = arith.constant 0 : i32
    %c0_i32_1 = arith.constant 0 : i32
    return %c0_i32, %c0_i32_0 : i32, i32
  }
  func.func @transform_7(%arg0: i32) -> (i32, i32) {
    %c0_i32 = arith.constant 0 : i32
    %c0_i32_0 = arith.constant 0 : i32
    %c0_i32_1 = arith.constant 0 : i32
    return %c0_i32, %c0_i32_0 : i32, i32
  }
  func.func @transform_8(%arg0: i32) -> (i32, i32) {
    %c0_i32 = arith.constant 0 : i32
    %c0_i32_0 = arith.constant 0 : i32
    %c0_i32_1 = arith.constant 0 : i32
    return %c0_i32, %c0_i32_0 : i32, i32
  }
  func.func @transform_9(%arg0: i32) -> (i32, i32) {
    %c0_i32 = arith.constant 0 : i32
    %c0_i32_0 = arith.constant 0 : i32
    return %arg0, %c0_i32 : i32, i32
  }
}

</mosaic_0001>

<llo_original>
// kernel: forward.1
$region0: #{forward.1}
  #allocation0 [shape = 'u32[]', space=smem, size = 0x4, offset = 0x4, fixed_abs, tag = 'smem constant byte address 0x4 - core index']
  #allocation1 [shape = 'u32[72,128]{1,0:T(1,128)}', space=vmem, size = 0x9000, scoped, tag = 'internal scratch']
  #allocation2 [shape = 'f32[64,128]{1,0:T(8,128)}', space=vmem, size = 0x8000, scoped, tag = 'scratch operand']
  #allocation3 [shape = 'f32[64,128]{1,0:T(8,128)}', space=vmem, size = 0x8000, scoped, tag = 'scratch operand']
  %s0 = inlined_call_operand.vmem [shape: f32[128,64], index: 0, kind: input, shape index: {}]
  %s1 = inlined_call_operand.vmem [shape: bf16[64,128], index: 1, kind: input, shape index: {}]
  %s2 = inlined_call_operand.vmem [shape: f32[1,128], index: 2, kind: input, shape index: {}]
  %s3 = inlined_call_operand.vmem [shape: bf16[64,128], index: 3, kind: input, shape index: {}]
  %s4 = inlined_call_operand.vmem [shape: f32[1,128], index: 4, kind: input, shape index: {}]
  %s5 = inlined_call_operand.vmem [shape: bf16[64,128], index: 5, kind: input, shape index: {}]
  %s6 = inlined_call_operand.vmem [shape: f32[1,128], index: 6, kind: input, shape index: {}]
  %s7 = inlined_call_operand.vmem [shape: bf16[64,128], index: 7, kind: input, shape index: {}]
  %s8 = inlined_call_operand.vmem [shape: f32[1,128], index: 8, kind: input, shape index: {}]
  %s9 = inlined_call_operand.hbm [shape: f32[16,32], index: 9, kind: output, shape index: {}]
  %s10 = sld [smem:[#allocation0]]
  $region69: #{forward.1} parent=0
    _
  %s12 = ssub.s32 1, %s10
  %s13 = scalar_select 0, %s12, %s10
  $region1: #{forward.1} parent=0
    #allocation4 [shape = 'u8[8192]{0}', space=vmem, size = 0x2000, scoped, tag = 'output window, operand 0']
    #allocation5 [shape = 's32[2]{0}', space=sflag, size = 0x8, scoped, tag = 'scoped memory for forward.1']
    %14 = vsyncpa [#allocation5], 0
    %s15 = scalar_lea.sflag [#allocation5], 1
    %16 = vsyncpa %s15, 0
    loop: start=0, step=1, limit=4
    $region2: #{forward.1} parent=1 // loop_pre_header
      _
    $region3: #{forward.1} parent=1 // loop_header
      %s18 = sphi 0, %s22
      %p19 = scmp.ge.s32.totalorder %s18, 4
      %s28 = sphi 0, %s30
      %s31 = sphi 0, %s28
      %s32 = sphi 0, %s31
      %s48 = sphi 0, %s32
      %s52 = sphi 0, %s52
      %s54 = sphi 0, %s52
      %s55 = sphi 0, %s54
      %s69 = sphi 0, %s55
      %s73 = sphi 0, %s73
      %s75 = sphi 0, %s73
      %s76 = sphi 0, %s75
      %s90 = sphi 0, %s76
      %s94 = sphi 0, %s94
      %s96 = sphi 0, %s94
      %s97 = sphi 0, %s96
      %s111 = sphi 0, %s97
      %s115 = sphi 0, %s115
      %s117 = sphi 0, %s115
      %s118 = sphi 0, %s117
      %s132 = sphi 0, %s118
      %s136 = sphi 0, %s136
      %s138 = sphi 0, %s136
      %s139 = sphi 0, %s138
      %s153 = sphi 0, %s139
      %s157 = sphi 0, %s157
      %s159 = sphi 0, %s157
      %s160 = sphi 0, %s159
      %s174 = sphi 0, %s160
      %s178 = sphi 0, %s178
      %s180 = sphi 0, %s178
      %s181 = sphi 0, %s180
      %s195 = sphi 0, %s181
      %s199 = sphi 0, %s199
      %s201 = sphi 0, %s199
      %s202 = sphi 0, %s201
      %s216 = sphi 0, %s202
      %s222 = sphi 0, %s224
      %s225 = sphi 0, %s222
      %s226 = sphi 0, %s225
      %s242 = sphi 0, %s226
    $region4: #{forward.1} parent=1 // loop_header_branch
      %21 = sbr.rel (%p19) target = $region8
    $region5: #{forward.1} parent=1 // loop_body
      %s23 = ssub.s32 %s18, 1
      %s24 = ssub.s32 %s18, 2
      %s25 = sadd.s32 %s18, 1
      %s26 = ssub.s32 %s18, %s25
      %p27 = scmp.eq.s32.totalorder %s26, 0
      %s29 = sadd.s32 %s28, 1
      %s30 = scalar_select %p27, %s28, %s29
      %p33 = pneg %p27
      %p34 = scmp.eq.s32.totalorder %s18, 1
      %p35 = por %p33, %p34
      %p36 = scmp.ne.s32.totalorder %s28, %s31
      %p37 = scmp.eq.s32.totalorder %s18, 0
      %p38 = por %p36, %p37
      %p39 = scmp.ne.s32.totalorder %s28, %s31
      %p40 = scmp.eq.s32.totalorder %s23, 1
      %p41 = por %p39, %p40
      %p42 = scmp.ne.s32.totalorder %s31, %s32
      %p43 = scmp.eq.s32.totalorder %s23, 0
      %p44 = por %p42, %p43
      %p45 = scmp.ne.s32.totalorder %s31, %s32
      %p46 = scmp.eq.s32.totalorder %s24, 1
      %p47 = por %p45, %p46
      %p49 = scmp.ne.s32.totalorder %s32, %s48
      %p50 = scmp.eq.s32.totalorder %s24, 0
      %p51 = por %p49, %p50
      %s53 = sadd.s32 %s52, 1
      %p56 = scmp.eq.s32.totalorder %s18, 1
      %p57 = scmp.ne.s32.totalorder %s52, %s54
      %p58 = scmp.eq.s32.totalorder %s18, 0
      %p59 = por %p57, %p58
      %p60 = scmp.ne.s32.totalorder %s52, %s54
      %p61 = scmp.eq.s32.totalorder %s23, 1
      %p62 = por %p60, %p61
      %p63 = scmp.ne.s32.totalorder %s54, %s55
      %p64 = scmp.eq.s32.totalorder %s23, 0
      %p65 = por %p63, %p64
      %p66 = scmp.ne.s32.totalorder %s54, %s55
      %p67 = scmp.eq.s32.totalorder %s24, 1
      %p68 = por %p66, %p67
      %p70 = scmp.ne.s32.totalorder %s55, %s69
      %p71 = scmp.eq.s32.totalorder %s24, 0
      %p72 = por %p70, %p71
      %s74 = sadd.s32 %s73, 1
      %p77 = scmp.eq.s32.totalorder %s18, 1
      %p78 = scmp.ne.s32.totalorder %s73, %s75
      %p79 = scmp.eq.s32.totalorder %s18, 0
      %p80 = por %p78, %p79
      %p81 = scmp.ne.s32.totalorder %s73, %s75
      %p82 = scmp.eq.s32.totalorder %s23, 1
      %p83 = por %p81, %p82
      %p84 = scmp.ne.s32.totalorder %s75, %s76
      %p85 = scmp.eq.s32.totalorder %s23, 0
      %p86 = por %p84, %p85
      %p87 = scmp.ne.s32.totalorder %s75, %s76
      %p88 = scmp.eq.s32.totalorder %s24, 1
      %p89 = por %p87, %p88
      %p91 = scmp.ne.s32.totalorder %s76, %s90
      %p92 = scmp.eq.s32.totalorder %s24, 0
      %p93 = por %p91, %p92
      %s95 = sadd.s32 %s94, 1
      %p98 = scmp.eq.s32.totalorder %s18, 1
      %p99 = scmp.ne.s32.totalorder %s94, %s96
      %p100 = scmp.eq.s32.totalorder %s18, 0
      %p101 = por %p99, %p100
      %p102 = scmp.ne.s32.totalorder %s94, %s96
      %p103 = scmp.eq.s32.totalorder %s23, 1
      %p104 = por %p102, %p103
      %p105 = scmp.ne.s32.totalorder %s96, %s97
      %p106 = scmp.eq.s32.totalorder %s23, 0
      %p107 = por %p105, %p106
      %p108 = scmp.ne.s32.totalorder %s96, %s97
      %p109 = scmp.eq.s32.totalorder %s24, 1
      %p110 = por %p108, %p109
      %p112 = scmp.ne.s32.totalorder %s97, %s111
      %p113 = scmp.eq.s32.totalorder %s24, 0
      %p114 = por %p112, %p113
      %s116 = sadd.s32 %s115, 1
      %p119 = scmp.eq.s32.totalorder %s18, 1
      %p120 = scmp.ne.s32.totalorder %s115, %s117
      %p121 = scmp.eq.s32.totalorder %s18, 0
      %p122 = por %p120, %p121
      %p123 = scmp.ne.s32.totalorder %s115, %s117
      %p124 = scmp.eq.s32.totalorder %s23, 1
      %p125 = por %p123, %p124
      %p126 = scmp.ne.s32.totalorder %s117, %s118
      %p127 = scmp.eq.s32.totalorder %s23, 0
      %p128 = por %p126, %p127
      %p129 = scmp.ne.s32.totalorder %s117, %s118
      %p130 = scmp.eq.s32.totalorder %s24, 1
      %p131 = por %p129, %p130
      %p133 = scmp.ne.s32.totalorder %s118, %s132
      %p134 = scmp.eq.s32.totalorder %s24, 0
      %p135 = por %p133, %p134
      %s137 = sadd.s32 %s136, 1
      %p140 = scmp.eq.s32.totalorder %s18, 1
      %p141 = scmp.ne.s32.totalorder %s136, %s138
      %p142 = scmp.eq.s32.totalorder %s18, 0
      %p143 = por %p141, %p142
      %p144 = scmp.ne.s32.totalorder %s136, %s138
      %p145 = scmp.eq.s32.totalorder %s23, 1
      %p146 = por %p144, %p145
      %p147 = scmp.ne.s32.totalorder %s138, %s139
      %p148 = scmp.eq.s32.totalorder %s23, 0
      %p149 = por %p147, %p148
      %p150 = scmp.ne.s32.totalorder %s138, %s139
      %p151 = scmp.eq.s32.totalorder %s24, 1
      %p152 = por %p150, %p151
      %p154 = scmp.ne.s32.totalorder %s139, %s153
      %p155 = scmp.eq.s32.totalorder %s24, 0
      %p156 = por %p154, %p155
      %s158 = sadd.s32 %s157, 1
      %p161 = scmp.eq.s32.totalorder %s18, 1
      %p162 = scmp.ne.s32.totalorder %s157, %s159
      %p163 = scmp.eq.s32.totalorder %s18, 0
      %p164 = por %p162, %p163
      %p165 = scmp.ne.s32.totalorder %s157, %s159
      %p166 = scmp.eq.s32.totalorder %s23, 1
      %p167 = por %p165, %p166
      %p168 = scmp.ne.s32.totalorder %s159, %s160
      %p169 = scmp.eq.s32.totalorder %s23, 0
      %p170 = por %p168, %p169
      %p171 = scmp.ne.s32.totalorder %s159, %s160
      %p172 = scmp.eq.s32.totalorder %s24, 1
      %p173 = por %p171, %p172
      %p175 = scmp.ne.s32.totalorder %s160, %s174
      %p176 = scmp.eq.s32.totalorder %s24, 0
      %p177 = por %p175, %p176
      %s179 = sadd.s32 %s178, 1
      %p182 = scmp.eq.s32.totalorder %s18, 1
      %p183 = scmp.ne.s32.totalorder %s178, %s180
      %p184 = scmp.eq.s32.totalorder %s18, 0
      %p185 = por %p183, %p184
      %p186 = scmp.ne.s32.totalorder %s178, %s180
      %p187 = scmp.eq.s32.totalorder %s23, 1
      %p188 = por %p186, %p187
      %p189 = scmp.ne.s32.totalorder %s180, %s181
      %p190 = scmp.eq.s32.totalorder %s23, 0
      %p191 = por %p189, %p190
      %p192 = scmp.ne.s32.totalorder %s180, %s181
      %p193 = scmp.eq.s32.totalorder %s24, 1
      %p194 = por %p192, %p193
      %p196 = scmp.ne.s32.totalorder %s181, %s195
      %p197 = scmp.eq.s32.totalorder %s24, 0
      %p198 = por %p196, %p197
      %s200 = sadd.s32 %s199, 1
      %p203 = scmp.eq.s32.totalorder %s18, 1
      %p204 = scmp.ne.s32.totalorder %s199, %s201
      %p205 = scmp.eq.s32.totalorder %s18, 0
      %p206 = por %p204, %p205
      %p207 = scmp.ne.s32.totalorder %s199, %s201
      %p208 = scmp.eq.s32.totalorder %s23, 1
      %p209 = por %p207, %p208
      %p210 = scmp.ne.s32.totalorder %s201, %s202
      %p211 = scmp.eq.s32.totalorder %s23, 0
      %p212 = por %p210, %p211
      %p213 = scmp.ne.s32.totalorder %s201, %s202
      %p214 = scmp.eq.s32.totalorder %s24, 1
      %p215 = por %p213, %p214
      %p217 = scmp.ne.s32.totalorder %s202, %s216
      %p218 = scmp.eq.s32.totalorder %s24, 0
      %p219 = por %p217, %p218
      %s220 = ssub.s32 %s18, %s25
      %p221 = scmp.eq.s32.totalorder %s220, 0
      %s223 = sadd.s32 %s222, 1
      %s224 = scalar_select %p221, %s222, %s223
      %p227 = pneg %p221
      %p228 = scmp.eq.s32.totalorder %s18, 1
      %p229 = por %p227, %p228
      %p230 = scmp.ne.s32.totalorder %s222, %s225
      %p231 = scmp.eq.s32.totalorder %s18, 0
      %p232 = por %p230, %p231
      %p233 = scmp.ne.s32.totalorder %s222, %s225
      %p234 = scmp.eq.s32.totalorder %s23, 1
      %p235 = por %p233, %p234
      %p236 = scmp.ne.s32.totalorder %s225, %s226
      %p237 = scmp.eq.s32.totalorder %s23, 0
      %p238 = por %p236, %p237
      %p239 = scmp.ne.s32.totalorder %s225, %s226
      %p240 = scmp.eq.s32.totalorder %s24, 1
      %p241 = por %p239, %p240
      %p243 = scmp.ne.s32.totalorder %s226, %s242
      %p244 = scmp.eq.s32.totalorder %s24, 0
      %p245 = por %p243, %p244
      %p246 = scmp.le.s32.totalorder 1, %s18
      %p247 = scmp.lt.s32.totalorder %s18, 3
      %p248 = pnand %p246, %p247
      %p249 = pneg %p248
      // Predicated region
      $region9: #{forward.1} parent=5 // pred_check
        _
      $region10: #{forward.1} parent=5 // pred_check_branch
        %251 = sbr.rel (%p248) target = $region12
      $region11: #{forward.1} parent=5 // pred_region
        %s252 = ssub.s32 %s18, 1
        // Predicated region
        $region13: #{forward.1} parent=11 // pred_check
          %p253 = pneg %p65
        $region14: #{forward.1} parent=11 // pred_check_branch
          %255 = sbr.rel (%p253) target = $region16
        $region15: #{forward.1} parent=11 // pred_region
          _
        $region16: #{forward.1} parent=11 // pred_fallthru
          _
        // Predicated region
        $region17: #{forward.1} parent=11 // pred_check
          %p256 = pneg %p86
        $region18: #{forward.1} parent=11 // pred_check_branch
          %258 = sbr.rel (%p256) target = $region20
        $region19: #{forward.1} parent=11 // pred_region
          _
        $region20: #{forward.1} parent=11 // pred_fallthru
          _
        // Predicated region
        $region21: #{forward.1} parent=11 // pred_check
          %p259 = pneg %p107
        $region22: #{forward.1} parent=11 // pred_check_branch
          %261 = sbr.rel (%p259) target = $region24
        $region23: #{forward.1} parent=11 // pred_region
          _
        $region24: #{forward.1} parent=11 // pred_fallthru
          _
        // Predicated region
        $region25: #{forward.1} parent=11 // pred_check
          %p262 = pneg %p128
        $region26: #{forward.1} parent=11 // pred_check_branch
          %264 = sbr.rel (%p262) target = $region28
        $region27: #{forward.1} parent=11 // pred_region
          _
        $region28: #{forward.1} parent=11 // pred_fallthru
          _
        // Predicated region
        $region29: #{forward.1} parent=11 // pred_check
          %p265 = pneg %p149
        $region30: #{forward.1} parent=11 // pred_check_branch
          %267 = sbr.rel (%p265) target = $region32
        $region31: #{forward.1} parent=11 // pred_region
          _
        $region32: #{forward.1} parent=11 // pred_fallthru
          _
        // Predicated region
        $region33: #{forward.1} parent=11 // pred_check
          %p268 = pneg %p170
        $region34: #{forward.1} parent=11 // pred_check_branch
          %270 = sbr.rel (%p268) target = $region36
        $region35: #{forward.1} parent=11 // pred_region
          _
        $region36: #{forward.1} parent=11 // pred_fallthru
          _
        // Predicated region
        $region37: #{forward.1} parent=11 // pred_check
          %p271 = pneg %p191
        $region38: #{forward.1} parent=11 // pred_check_branch
          %273 = sbr.rel (%p271) target = $region40
        $region39: #{forward.1} parent=11 // pred_region
          _
        $region40: #{forward.1} parent=11 // pred_fallthru
          _
        // Predicated region
        $region41: #{forward.1} parent=11 // pred_check
          %p274 = pneg %p212
        $region42: #{forward.1} parent=11 // pred_check_branch
          %276 = sbr.rel (%p274) target = $region44
        $region43: #{forward.1} parent=11 // pred_region
          _
        $region44: #{forward.1} parent=11 // pred_fallthru
          _
      $region12: #{forward.1} parent=5 // pred_fallthru
        _
      %p277 = scmp.lt.s32.totalorder %s18, 2
      // Predicated region
      $region45: #{forward.1} parent=5 // pred_check
        %p278 = pneg %p277
      $region46: #{forward.1} parent=5 // pred_check_branch
        %280 = sbr.rel (%p278) target = $region48
      $region47: #{forward.1} parent=5 // pred_region
        // Predicated region
        $region49: #{forward.1} parent=47 // pred_check
          %p281 = pneg %p38
        $region50: #{forward.1} parent=47 // pred_check_branch
          %283 = sbr.rel (%p281) target = $region52
        $region51: #{forward.1} parent=47 // pred_region
          %s284 = smul.u32 8, %s18
          %p285 = scmp.lt.s32.totalorder %s284, 15
          %s286 = scalar_select %p285, %s284, 15
          %s287 = smul.addr %s286, 8
          %s288 = scalar_lea.vmem %s0, %s287
          %s289 = smul.u32 8, %s18
        $region52: #{forward.1} parent=47 // pred_fallthru
          _
      $region48: #{forward.1} parent=5 // pred_fallthru
        _
      %p290 = scmp.le.s32.totalorder 1, %s18
      %p291 = scmp.lt.s32.totalorder %s18, 3
      %p292 = pnand %p290, %p291
      %p293 = pneg %p292
      // Predicated region
      $region53: #{forward.1} parent=5 // pred_check
        _
      $region54: #{forward.1} parent=5 // pred_check_branch
        %295 = sbr.rel (%p292) target = $region56
      $region55: #{forward.1} parent=5 // pred_region
        %s296 = ssub.s32 %s18, 1
        %s297 = smul.u32 8, %s23
        %p298 = scmp.lt.s32.totalorder %s297, 15
        %s299 = scalar_select %p298, %s297, 15
        %s300 = smul.addr %s299, 8
        %s301 = scalar_lea.vmem %s0, %s300
        %p302 = pneg %p44
        %p303 = pneg %p41
        %p304 = pneg %p65
        %p305 = pneg %p62
        %p306 = pneg %p86
        %p307 = pneg %p83
        %p308 = pneg %p107
        %p309 = pneg %p104
        %p310 = pneg %p128
        %p311 = pneg %p125
        %p312 = pneg %p149
        %p313 = pneg %p146
        %p314 = pneg %p170
        %p315 = pneg %p167
        %p316 = pneg %p191
        %p317 = pneg %p188
        %p318 = pneg %p212
        %p319 = pneg %p209
        %p320 = pneg %p238
        %p321 = pneg %p235
        %s322 = sand.u32 %s225, 1
        %s323 = scalar_lea.sflag [#allocation5], %s322
        %s324 = sand.u32 %s225, 1
        %s325 = smul.addr %s324, 8
        %s326 = scalar_lea.vmem [#allocation4], %s325
        %s327 = smul.u32 8, %s23
        %p328 = scmp.lt.s32.totalorder %s327, 15
        %s329 = scalar_select %p328, %s327, 15
        %s330 = smul.addr %s329, 8
        %s331 = scalar_lea.vmem %s0, %s330
        %s332 = smul.u32 8, %s23
        %v334 = vld [vmem:[%s331] sm:$0xff]
        %v335 = vld [vmem:[%s331 + $0x8] sm:$0xff]
        %v336 = vld [vmem:[%s331 + $0x10] sm:$0xff]
        %v337 = vld [vmem:[%s331 + $0x18] sm:$0xff]
        %v338 = vld [vmem:[%s331 + $0x20] sm:$0xff]
        %v339 = vld [vmem:[%s331 + $0x28] sm:$0xff]
        %v340 = vld [vmem:[%s331 + $0x30] sm:$0xff]
        %v341 = vld [vmem:[%s331 + $0x38] sm:$0xff]
        %vm342 = vcmask 523264
        %v343 = vsel %vm342, %v334, 0.0
        %344 = vadd.xlane.f32.xlu0 %v343
        %v345 = vpop.xlane.xlu0 %344
        %v346 = vsel %vm342, %v335, 0.0
        %347 = vadd.xlane.f32.xlu0 %v346
        %v348 = vpop.xlane.xlu0 %347
        %v349 = vsel %vm342, %v336, 0.0
        %350 = vadd.xlane.f32.xlu0 %v349
        %v351 = vpop.xlane.xlu0 %350
        %v352 = vsel %vm342, %v337, 0.0
        %353 = vadd.xlane.f32.xlu0 %v352
        %v354 = vpop.xlane.xlu0 %353
        %v355 = vsel %vm342, %v338, 0.0
        %356 = vadd.xlane.f32.xlu0 %v355
        %v357 = vpop.xlane.xlu0 %356
        %v358 = vsel %vm342, %v339, 0.0
        %359 = vadd.xlane.f32.xlu0 %v358
        %v360 = vpop.xlane.xlu0 %359
        %v361 = vsel %vm342, %v340, 0.0
        %362 = vadd.xlane.f32.xlu0 %v361
        %v363 = vpop.xlane.xlu0 %362
        %v364 = vsel %vm342, %v341, 0.0
        %365 = vadd.xlane.f32.xlu0 %v364
        %v366 = vpop.xlane.xlu0 %365
        %v367 = vmul.f32 %v334, %v334
        %v368 = vmul.f32 %v335, %v335
        %v369 = vmul.f32 %v336, %v336
        %v370 = vmul.f32 %v337, %v337
        %v371 = vmul.f32 %v338, %v338
        %v372 = vmul.f32 %v339, %v339
        %v373 = vmul.f32 %v340, %v340
        %v374 = vmul.f32 %v341, %v341
        %v375 = vsel %vm342, %v367, 0.0
        %376 = vadd.xlane.f32.xlu0 %v375
        %v377 = vpop.xlane.xlu0 %376
        %v378 = vsel %vm342, %v368, 0.0
        %379 = vadd.xlane.f32.xlu0 %v378
        %v380 = vpop.xlane.xlu0 %379
        %v381 = vsel %vm342, %v369, 0.0
        %382 = vadd.xlane.f32.xlu0 %v381
        %v383 = vpop.xlane.xlu0 %382
        %v384 = vsel %vm342, %v370, 0.0
        %385 = vadd.xlane.f32.xlu0 %v384
        %v386 = vpop.xlane.xlu0 %385
        %v387 = vsel %vm342, %v371, 0.0
        %388 = vadd.xlane.f32.xlu0 %v387
        %v389 = vpop.xlane.xlu0 %388
        %v390 = vsel %vm342, %v372, 0.0
        %391 = vadd.xlane.f32.xlu0 %v390
        %v392 = vpop.xlane.xlu0 %391
        %v393 = vsel %vm342, %v373, 0.0
        %394 = vadd.xlane.f32.xlu0 %v393
        %v395 = vpop.xlane.xlu0 %394
        %v396 = vsel %vm342, %v374, 0.0
        %397 = vadd.xlane.f32.xlu0 %v396
        %v398 = vpop.xlane.xlu0 %397
        %v399 = vmul.f32 %v345, 0.015625
        %v400 = vmul.f32 %v348, 0.015625
        %v401 = vmul.f32 %v351, 0.015625
        %v402 = vmul.f32 %v354, 0.015625
        %v403 = vmul.f32 %v357, 0.015625
        %v404 = vmul.f32 %v360, 0.015625
        %v405 = vmul.f32 %v363, 0.015625
        %v406 = vmul.f32 %v366, 0.015625
        %v407 = vmul.f32 %v377, 0.015625
        %v408 = vmul.f32 %v380, 0.015625
        %v409 = vmul.f32 %v383, 0.015625
        %v410 = vmul.f32 %v386, 0.015625
        %v411 = vmul.f32 %v389, 0.015625
        %v412 = vmul.f32 %v392, 0.015625
        %v413 = vmul.f32 %v395, 0.015625
        %v414 = vmul.f32 %v398, 0.015625
        %v415 = vmul.f32 %v399, %v399
        %v416 = vmul.f32 %v400, %v400
        %v417 = vmul.f32 %v401, %v401
        %v418 = vmul.f32 %v402, %v402
        %v419 = vmul.f32 %v403, %v403
        %v420 = vmul.f32 %v404, %v404
        %v421 = vmul.f32 %v405, %v405
        %v422 = vmul.f32 %v406, %v406
        %v423 = vsub.f32 %v407, %v415
        %v424 = vsub.f32 %v408, %v416
        %v425 = vsub.f32 %v409, %v417
        %v426 = vsub.f32 %v410, %v418
        %v427 = vsub.f32 %v411, %v419
        %v428 = vsub.f32 %v412, %v420
        %v429 = vsub.f32 %v413, %v421
        %v430 = vsub.f32 %v414, %v422
        %v431 = vadd.f32 %v423, 1e-05
        %v432 = vadd.f32 %v424, 1e-05
        %v433 = vadd.f32 %v425, 1e-05
        %v434 = vadd.f32 %v426, 1e-05
        %v435 = vadd.f32 %v427, 1e-05
        %v436 = vadd.f32 %v428, 1e-05
        %v437 = vadd.f32 %v429, 1e-05
        %v438 = vadd.f32 %v430, 1e-05
        %v439 = vrsqrt.pop %v431
        %v440 = vmul.f32 %v439, %v431
        %v441 = vmul.f32 %v440, %v439
        %v442 = vmul.f32 0.5, %v441
        %v443 = vsub.f32 1.5, %v442
        %v444 = vmul.f32 %v439, %v443
        %vm445 = vweird.f32 %v431
        %vm446 = vweird.f32 %v439
        %vm447 = vmor %vm445, %vm446
        %v448 = vsel %vm447, %v439, %v444
        %v449 = vrsqrt.pop %v432
        %v450 = vmul.f32 %v449, %v432
        %v451 = vmul.f32 %v450, %v449
        %v452 = vmul.f32 0.5, %v451
        %v453 = vsub.f32 1.5, %v452
        %v454 = vmul.f32 %v449, %v453
        %vm455 = vweird.f32 %v432
        %vm456 = vweird.f32 %v449
        %vm457 = vmor %vm455, %vm456
        %v458 = vsel %vm457, %v449, %v454
        %v459 = vrsqrt.pop %v433
        %v460 = vmul.f32 %v459, %v433
        %v461 = vmul.f32 %v460, %v459
        %v462 = vmul.f32 0.5, %v461
        %v463 = vsub.f32 1.5, %v462
        %v464 = vmul.f32 %v459, %v463
        %vm465 = vweird.f32 %v433
        %vm466 = vweird.f32 %v459
        %vm467 = vmor %vm465, %vm466
        %v468 = vsel %vm467, %v459, %v464
        %v469 = vrsqrt.pop %v434
        %v470 = vmul.f32 %v469, %v434
        %v471 = vmul.f32 %v470, %v469
        %v472 = vmul.f32 0.5, %v471
        %v473 = vsub.f32 1.5, %v472
        %v474 = vmul.f32 %v469, %v473
        %vm475 = vweird.f32 %v434
        %vm476 = vweird.f32 %v469
        %vm477 = vmor %vm475, %vm476
        %v478 = vsel %vm477, %v469, %v474
        %v479 = vrsqrt.pop %v435
        %v480 = vmul.f32 %v479, %v435
        %v481 = vmul.f32 %v480, %v479
        %v482 = vmul.f32 0.5, %v481
        %v483 = vsub.f32 1.5, %v482
        %v484 = vmul.f32 %v479, %v483
        %vm485 = vweird.f32 %v435
        %vm486 = vweird.f32 %v479
        %vm487 = vmor %vm485, %vm486
        %v488 = vsel %vm487, %v479, %v484
        %v489 = vrsqrt.pop %v436
        %v490 = vmul.f32 %v489, %v436
        %v491 = vmul.f32 %v490, %v489
        %v492 = vmul.f32 0.5, %v491
        %v493 = vsub.f32 1.5, %v492
        %v494 = vmul.f32 %v489, %v493
        %vm495 = vweird.f32 %v436
        %vm496 = vweird.f32 %v489
        %vm497 = vmor %vm495, %vm496
        %v498 = vsel %vm497, %v489, %v494
        %v499 = vrsqrt.pop %v437
        %v500 = vmul.f32 %v499, %v437
        %v501 = vmul.f32 %v500, %v499
        %v502 = vmul.f32 0.5, %v501
        %v503 = vsub.f32 1.5, %v502
        %v504 = vmul.f32 %v499, %v503
        %vm505 = vweird.f32 %v437
        %vm506 = vweird.f32 %v499
        %vm507 = vmor %vm505, %vm506
        %v508 = vsel %vm507, %v499, %v504
        %v509 = vrsqrt.pop %v438
        %v510 = vmul.f32 %v509, %v438
        %v511 = vmul.f32 %v510, %v509
        %v512 = vmul.f32 0.5, %v511
        %v513 = vsub.f32 1.5, %v512
        %v514 = vmul.f32 %v509, %v513
        %vm515 = vweird.f32 %v438
        %vm516 = vweird.f32 %v509
        %vm517 = vmor %vm515, %vm516
        %v518 = vsel %vm517, %v509, %v514
        %v519 = vsub.f32 %v334, %v399
        %v520 = vsub.f32 %v335, %v400
        %v521 = vsub.f32 %v336, %v401
        %v522 = vsub.f32 %v337, %v402
        %v523 = vsub.f32 %v338, %v403
        %v524 = vsub.f32 %v339, %v404
        %v525 = vsub.f32 %v340, %v405
        %v526 = vsub.f32 %v341, %v406
        %v527 = vmul.f32 %v519, %v448
        %v528 = vmul.f32 %v520, %v458
        %v529 = vmul.f32 %v521, %v468
        %v530 = vmul.f32 %v522, %v478
        %v531 = vmul.f32 %v523, %v488
        %v532 = vmul.f32 %v524, %v498
        %v533 = vmul.f32 %v525, %v508
        %v534 = vmul.f32 %v526, %v518
        %v535 = vpack.c.bf16 %v528, %v527
        %v536 = vpack.c.bf16 %v530, %v529
        %v537 = vpack.c.bf16 %v532, %v531
        %v538 = vpack.c.bf16 %v534, %v533
        %v539 = vld [vmem:[%s1] sm:$0xf]
        %v540 = vld [vmem:[%s1 + $0x4] sm:$0xf]
        %v541 = vld [vmem:[%s1 + $0x8] sm:$0xf]
        %v542 = vld [vmem:[%s1 + $0xc] sm:$0xf]
        %v543 = vld [vmem:[%s1 + $0x10] sm:$0xf]
        %v544 = vld [vmem:[%s1 + $0x14] sm:$0xf]
        %v545 = vld [vmem:[%s1 + $0x18] sm:$0xf]
        %v546 = vld [vmem:[%s1 + $0x1c] sm:$0xf]
        %v547 = vld [vmem:[%s2] sm:$0x1]
        %v549 = vperm.slane %v547, 0
        %v559 = vunpack.c.l.b16 %v539
        %v560 = vunpack.c.l.b16 %v540
        %v561 = vunpack.c.l.b16 %v541
        %v562 = vunpack.c.l.b16 %v542
        %v563 = vunpack.c.l.b16 %v543
        %v564 = vunpack.c.l.b16 %v544
        %v565 = vunpack.c.l.b16 %v545
        %v566 = vunpack.c.l.b16 %v546
        %v567 = vpack.c.b16 %v560, %v559
        %v568 = vpack.c.b16 %v562, %v561
        %v569 = vpack.c.b16 %v564, %v563
        %v570 = vpack.c.b16 %v566, %v565
        %v576 = vsel %vm342, %v535, 0
        %v579 = vsel %vm342, %v536, 0
        %v582 = vsel %vm342, %v537, 0
        %v585 = vsel %vm342, %v538, 0
        %587 = vmatpush.bf16.msra.mxu0 0
        %588 = vmatpush.bf16.msra.mxu0 0
        %589 = vmatpush.bf16.msra.mxu0 0
        %590 = vmatpush.bf16.msra.mxu0 0
        %591 = vmatpush.bf16.msra.mxu0 %v570
        %592 = vmatpush.bf16.msra.mxu0 %v569
        %593 = vmatpush.bf16.msra.mxu0 %v568
        %594 = vmatpush.bf16.msra.mxu0 %v567
        %595 = vmatmul.bf16.gmra.mxu0 %v576
        %v596 = vpop.f32.mrf.mxu0
        %v597 = vadd.f32 %v549, %v596
        %v598 = vpop.f32.mrf.mxu0
        %v599 = vadd.f32 %v549, %v598
        %600 = vmatmul.bf16.gmra.mxu0 %v579
        %v601 = vpop.f32.mrf.mxu0
        %v602 = vadd.f32 %v549, %v601
        %v603 = vpop.f32.mrf.mxu0
        %v604 = vadd.f32 %v549, %v603
        %605 = vmatmul.bf16.gmra.mxu0 %v582
        %v606 = vpop.f32.mrf.mxu0
        %v607 = vadd.f32 %v549, %v606
        %v608 = vpop.f32.mrf.mxu0
        %v609 = vadd.f32 %v549, %v608
        %610 = vmatmul.bf16.gmra.mxu0 %v585
        %v611 = vpop.f32.mrf.mxu0
        %v612 = vadd.f32 %v549, %v611
        %v613 = vpop.f32.mrf.mxu0
        %v614 = vadd.f32 %v549, %v613
        %615 = vdwg.mxu0
        %v616 = vmax.f32 %v597, 0.0
        %v617 = vmax.f32 %v599, 0.0
        %v618 = vmax.f32 %v602, 0.0
        %v619 = vmax.f32 %v604, 0.0
        %v620 = vmax.f32 %v607, 0.0
        %v621 = vmax.f32 %v609, 0.0
        %v622 = vmax.f32 %v612, 0.0
        %v623 = vmax.f32 %v614, 0.0
        %624 = vst [vmem:[#allocation2] sm:$0xff] %v616
        %625 = vst [vmem:[#allocation2 + $0x8] sm:$0xff] %v617
        %626 = vst [vmem:[#allocation2 + $0x10] sm:$0xff] %v618
        %627 = vst [vmem:[#allocation2 + $0x18] sm:$0xff] %v619
        %628 = vst [vmem:[#allocation2 + $0x20] sm:$0xff] %v620
        %629 = vst [vmem:[#allocation2 + $0x28] sm:$0xff] %v621
        %630 = vst [vmem:[#allocation2 + $0x30] sm:$0xff] %v622
        %631 = vst [vmem:[#allocation2 + $0x38] sm:$0xff] %v623
        %v632 = vld [vmem:[#allocation2] ss:$2 sm:$0xff]
        %s633 = scalar_lea.vmem [#allocation2], 16
        %v634 = vld [vmem:[%s633] ss:$2 sm:$0xff]
        %s635 = scalar_lea.vmem [#allocation2], 32
        %v636 = vld [vmem:[%s635] ss:$2 sm:$0xff]
        %s637 = scalar_lea.vmem [#allocation2], 48
        %v638 = vld [vmem:[%s637] ss:$2 sm:$0xff]
        %s639 = scalar_lea.vmem [#allocation2], 1
        %v640 = vld [vmem:[%s639] ss:$2 sm:$0xff]
        %s641 = scalar_lea.vmem [#allocation2], 17
        %v642 = vld [vmem:[%s641] ss:$2 sm:$0xff]
        %s643 = scalar_lea.vmem [#allocation2], 33
        %v644 = vld [vmem:[%s643] ss:$2 sm:$0xff]
        %s645 = scalar_lea.vmem [#allocation2], 49
        %v646 = vld [vmem:[%s645] ss:$2 sm:$0xff]
        %651 = vrot.lane.b32.xlu0 %v640, 32
        %v652 = vpop.permute.xlu0 %651
        %653 = vrot.lane.b32.xlu0 %v642, 32
        %v654 = vpop.permute.xlu0 %653
        %655 = vrot.lane.b32.xlu0 %v644, 32
        %v656 = vpop.permute.xlu0 %655
        %657 = vrot.lane.b32.xlu0 %v646, 32
        %v658 = vpop.permute.xlu0 %657
        %vm663 = vcmask 261120
        %v664 = vsel %vm663, %v632, %v652
        %v665 = vsel %vm663, %v634, %v654
        %v666 = vsel %vm663, %v636, %v656
        %v667 = vsel %vm663, %v638, %v658
        %v668 = vsel %vm342, %v664, 0.0
        %669 = vadd.xlane.f32.xlu0 %v668
        %v670 = vpop.xlane.xlu0 %669
        %v671 = vsel %vm342, %v665, 0.0
        %672 = vadd.xlane.f32.xlu0 %v671
        %v673 = vpop.xlane.xlu0 %672
        %v674 = vsel %vm342, %v666, 0.0
        %675 = vadd.xlane.f32.xlu0 %v674
        %v676 = vpop.xlane.xlu0 %675
        %v677 = vsel %vm342, %v667, 0.0
        %678 = vadd.xlane.f32.xlu0 %v677
        %v679 = vpop.xlane.xlu0 %678
        %v680 = vmul.f32 %v664, %v664
        %v681 = vmul.f32 %v665, %v665
        %v682 = vmul.f32 %v666, %v666
        %v683 = vmul.f32 %v667, %v667
        %v684 = vsel %vm342, %v680, 0.0
        %685 = vadd.xlane.f32.xlu0 %v684
        %v686 = vpop.xlane.xlu0 %685
        %v687 = vsel %vm342, %v681, 0.0
        %688 = vadd.xlane.f32.xlu0 %v687
        %v689 = vpop.xlane.xlu0 %688
        %v690 = vsel %vm342, %v682, 0.0
        %691 = vadd.xlane.f32.xlu0 %v690
        %v692 = vpop.xlane.xlu0 %691
        %v693 = vsel %vm342, %v683, 0.0
        %694 = vadd.xlane.f32.xlu0 %v693
        %v695 = vpop.xlane.xlu0 %694
        %v696 = vmul.f32 %v670, 0.015625
        %v697 = vmul.f32 %v673, 0.015625
        %v698 = vmul.f32 %v676, 0.015625
        %v699 = vmul.f32 %v679, 0.015625
        %v700 = vmul.f32 %v686, 0.015625
        %v701 = vmul.f32 %v689, 0.015625
        %v702 = vmul.f32 %v692, 0.015625
        %v703 = vmul.f32 %v695, 0.015625
        %v704 = vmul.f32 %v696, %v696
        %v705 = vmul.f32 %v697, %v697
        %v706 = vmul.f32 %v698, %v698
        %v707 = vmul.f32 %v699, %v699
        %v708 = vsub.f32 %v700, %v704
        %v709 = vsub.f32 %v701, %v705
        %v710 = vsub.f32 %v702, %v706
        %v711 = vsub.f32 %v703, %v707
        %v712 = vadd.f32 %v708, 1e-05
        %v713 = vadd.f32 %v709, 1e-05
        %v714 = vadd.f32 %v710, 1e-05
        %v715 = vadd.f32 %v711, 1e-05
        %v716 = vrsqrt.pop %v712
        %v717 = vmul.f32 %v716, %v712
        %v718 = vmul.f32 %v717, %v716
        %v719 = vmul.f32 0.5, %v718
        %v720 = vsub.f32 1.5, %v719
        %v721 = vmul.f32 %v716, %v720
        %vm722 = vweird.f32 %v712
        %vm723 = vweird.f32 %v716
        %vm724 = vmor %vm722, %vm723
        %v725 = vsel %vm724, %v716, %v721
        %v726 = vrsqrt.pop %v713
        %v727 = vmul.f32 %v726, %v713
        %v728 = vmul.f32 %v727, %v726
        %v729 = vmul.f32 0.5, %v728
        %v730 = vsub.f32 1.5, %v729
        %v731 = vmul.f32 %v726, %v730
        %vm732 = vweird.f32 %v713
        %vm733 = vweird.f32 %v726
        %vm734 = vmor %vm732, %vm733
        %v735 = vsel %vm734, %v726, %v731
        %v736 = vrsqrt.pop %v714
        %v737 = vmul.f32 %v736, %v714
        %v738 = vmul.f32 %v737, %v736
        %v739 = vmul.f32 0.5, %v738
        %v740 = vsub.f32 1.5, %v739
        %v741 = vmul.f32 %v736, %v740
        %vm742 = vweird.f32 %v714
        %vm743 = vweird.f32 %v736
        %vm744 = vmor %vm742, %vm743
        %v745 = vsel %vm744, %v736, %v741
        %v746 = vrsqrt.pop %v715
        %v747 = vmul.f32 %v746, %v715
        %v748 = vmul.f32 %v747, %v746
        %v749 = vmul.f32 0.5, %v748
        %v750 = vsub.f32 1.5, %v749
        %v751 = vmul.f32 %v746, %v750
        %vm752 = vweird.f32 %v715
        %vm753 = vweird.f32 %v746
        %vm754 = vmor %vm752, %vm753
        %v755 = vsel %vm754, %v746, %v751
        %v756 = vsub.f32 %v664, %v696
        %v757 = vsub.f32 %v665, %v697
        %v758 = vsub.f32 %v666, %v698
        %v759 = vsub.f32 %v667, %v699
        %v760 = vmul.f32 %v756, %v725
        %v761 = vmul.f32 %v757, %v735
        %v762 = vmul.f32 %v758, %v745
        %v763 = vmul.f32 %v759, %v755
        %v764 = vpack.c.bf16 %v761, %v760
        %v765 = vpack.c.bf16 %v763, %v762
        %v766 = vld [vmem:[%s3] sm:$0xf]
        %v767 = vld [vmem:[%s3 + $0x4] sm:$0xf]
        %v768 = vld [vmem:[%s3 + $0x8] sm:$0xf]
        %v769 = vld [vmem:[%s3 + $0xc] sm:$0xf]
        %v770 = vld [vmem:[%s3 + $0x10] sm:$0xf]
        %v771 = vld [vmem:[%s3 + $0x14] sm:$0xf]
        %v772 = vld [vmem:[%s3 + $0x18] sm:$0xf]
        %v773 = vld [vmem:[%s3 + $0x1c] sm:$0xf]
        %v774 = vld [vmem:[%s4] sm:$0x1]
        %v776 = vperm.slane %v774, 0
        %v786 = vunpack.c.l.b16 %v766
        %v787 = vunpack.c.l.b16 %v767
        %v788 = vunpack.c.l.b16 %v768
        %v789 = vunpack.c.l.b16 %v769
        %v790 = vunpack.c.l.b16 %v770
        %v791 = vunpack.c.l.b16 %v771
        %v792 = vunpack.c.l.b16 %v772
        %v793 = vunpack.c.l.b16 %v773
        %v794 = vpack.c.b16 %v787, %v786
        %v795 = vpack.c.b16 %v789, %v788
        %v796 = vpack.c.b16 %v791, %v790
        %v797 = vpack.c.b16 %v793, %v792
        %v803 = vsel %vm342, %v764, 0
        %v806 = vsel %vm342, %v765, 0
        %808 = vmatpush.bf16.msra.mxu0 0
        %809 = vmatpush.bf16.msra.mxu0 0
        %810 = vmatpush.bf16.msra.mxu0 0
        %811 = vmatpush.bf16.msra.mxu0 0
        %812 = vmatpush.bf16.msra.mxu0 %v797
        %813 = vmatpush.bf16.msra.mxu0 %v796
        %814 = vmatpush.bf16.msra.mxu0 %v795
        %815 = vmatpush.bf16.msra.mxu0 %v794
        %816 = vmatmul.bf16.gmra.mxu0 %v803
        %v817 = vpop.f32.mrf.mxu0
        %v818 = vadd.f32 %v776, %v817
        %v819 = vpop.f32.mrf.mxu0
        %v820 = vadd.f32 %v776, %v819
        %821 = vmatmul.bf16.gmra.mxu0 %v806
        %v822 = vpop.f32.mrf.mxu0
        %v823 = vadd.f32 %v776, %v822
        %v824 = vpop.f32.mrf.mxu0
        %v825 = vadd.f32 %v776, %v824
        %826 = vdwg.mxu0
        %v827 = vmax.f32 %v818, 0.0
        %v828 = vmax.f32 %v820, 0.0
        %v829 = vmax.f32 %v823, 0.0
        %v830 = vmax.f32 %v825, 0.0
        %831 = vst [vmem:[#allocation3] sm:$0xff] %v827
        %832 = vst [vmem:[#allocation3 + $0x8] sm:$0xff] %v828
        %833 = vst [vmem:[#allocation3 + $0x10] sm:$0xff] %v829
        %834 = vst [vmem:[#allocation3 + $0x18] sm:$0xff] %v830
        %v835 = vld [vmem:[#allocation3] ss:$2 sm:$0xff]
        %s836 = scalar_lea.vmem [#allocation3], 16
        %v837 = vld [vmem:[%s836] ss:$2 sm:$0xff]
        %s838 = scalar_lea.vmem [#allocation3], 1
        %v839 = vld [vmem:[%s838] ss:$2 sm:$0xff]
        %s840 = scalar_lea.vmem [#allocation3], 17
        %v841 = vld [vmem:[%s840] ss:$2 sm:$0xff]
        %844 = vrot.lane.b32.xlu0 %v839, 32
        %v845 = vpop.permute.xlu0 %844
        %846 = vrot.lane.b32.xlu0 %v841, 32
        %v847 = vpop.permute.xlu0 %846
        %v850 = vsel %vm663, %v835, %v845
        %v851 = vsel %vm663, %v837, %v847
        %v852 = vsel %vm342, %v850, 0.0
        %853 = vadd.xlane.f32.xlu0 %v852
        %v854 = vpop.xlane.xlu0 %853
        %v855 = vsel %vm342, %v851, 0.0
        %856 = vadd.xlane.f32.xlu0 %v855
        %v857 = vpop.xlane.xlu0 %856
        %v858 = vmul.f32 %v850, %v850
        %v859 = vmul.f32 %v851, %v851
        %v860 = vsel %vm342, %v858, 0.0
        %861 = vadd.xlane.f32.xlu0 %v860
        %v862 = vpop.xlane.xlu0 %861
        %v863 = vsel %vm342, %v859, 0.0
        %864 = vadd.xlane.f32.xlu0 %v863
        %v865 = vpop.xlane.xlu0 %864
        %v866 = vmul.f32 %v854, 0.015625
        %v867 = vmul.f32 %v857, 0.015625
        %v868 = vmul.f32 %v862, 0.015625
        %v869 = vmul.f32 %v865, 0.015625
        %v870 = vmul.f32 %v866, %v866
        %v871 = vmul.f32 %v867, %v867
        %v872 = vsub.f32 %v868, %v870
        %v873 = vsub.f32 %v869, %v871
        %v874 = vadd.f32 %v872, 1e-05
        %v875 = vadd.f32 %v873, 1e-05
        %v876 = vrsqrt.pop %v874
        %v877 = vmul.f32 %v876, %v874
        %v878 = vmul.f32 %v877, %v876
        %v879 = vmul.f32 0.5, %v878
        %v880 = vsub.f32 1.5, %v879
        %v881 = vmul.f32 %v876, %v880
        %vm882 = vweird.f32 %v874
        %vm883 = vweird.f32 %v876
        %vm884 = vmor %vm882, %vm883
        %v885 = vsel %vm884, %v876, %v881
        %v886 = vrsqrt.pop %v875
        %v887 = vmul.f32 %v886, %v875
        %v888 = vmul.f32 %v887, %v886
        %v889 = vmul.f32 0.5, %v888
        %v890 = vsub.f32 1.5, %v889
        %v891 = vmul.f32 %v886, %v890
        %vm892 = vweird.f32 %v875
        %vm893 = vweird.f32 %v886
        %vm894 = vmor %vm892, %vm893
        %v895 = vsel %vm894, %v886, %v891
        %v896 = vsub.f32 %v850, %v866
        %v897 = vsub.f32 %v851, %v867
        %v898 = vmul.f32 %v896, %v885
        %v899 = vmul.f32 %v897, %v895
        %v900 = vpack.c.bf16 %v899, %v898
        %v901 = vld [vmem:[%s5] sm:$0xf]
        %v902 = vld [vmem:[%s5 + $0x4] sm:$0xf]
        %v903 = vld [vmem:[%s5 + $0x8] sm:$0xf]
        %v904 = vld [vmem:[%s5 + $0xc] sm:$0xf]
        %v905 = vld [vmem:[%s5 + $0x10] sm:$0xf]
        %v906 = vld [vmem:[%s5 + $0x14] sm:$0xf]
        %v907 = vld [vmem:[%s5 + $0x18] sm:$0xf]
        %v908 = vld [vmem:[%s5 + $0x1c] sm:$0xf]
        %v909 = vld [vmem:[%s6] sm:$0x1]
        %v911 = vperm.slane %v909, 0
        %v921 = vunpack.c.l.b16 %v901
        %v922 = vunpack.c.l.b16 %v902
        %v923 = vunpack.c.l.b16 %v903
        %v924 = vunpack.c.l.b16 %v904
        %v925 = vunpack.c.l.b16 %v905
        %v926 = vunpack.c.l.b16 %v906
        %v927 = vunpack.c.l.b16 %v907
        %v928 = vunpack.c.l.b16 %v908
        %v929 = vpack.c.b16 %v922, %v921
        %v930 = vpack.c.b16 %v924, %v923
        %v931 = vpack.c.b16 %v926, %v925
        %v932 = vpack.c.b16 %v928, %v927
        %v938 = vsel %vm342, %v900, 0
        %940 = vmatpush.bf16.msra.mxu0 0
        %941 = vmatpush.bf16.msra.mxu0 0
        %942 = vmatpush.bf16.msra.mxu0 0
        %943 = vmatpush.bf16.msra.mxu0 0
        %944 = vmatpush.bf16.msra.mxu0 %v932
        %945 = vmatpush.bf16.msra.mxu0 %v931
        %946 = vmatpush.bf16.msra.mxu0 %v930
        %947 = vmatpush.bf16.msra.mxu0 %v929
        %948 = vmatmul.bf16.gmra.mxu0 %v938
        %v949 = vpop.f32.mrf.mxu0
        %v950 = vadd.f32 %v911, %v949
        %v951 = vpop.f32.mrf.mxu0
        %v952 = vadd.f32 %v911, %v951
        %953 = vdwg.mxu0
        %v954 = vmax.f32 %v950, 0.0
        %v955 = vmax.f32 %v952, 0.0
        %956 = vst [vmem:[#allocation2] sm:$0xff] %v954
        %957 = vst [vmem:[#allocation2 + $0x8] sm:$0xff] %v955
        %v958 = vld [vmem:[#allocation2] ss:$2 sm:$0xff]
        %v959 = vld [vmem:[%s639] ss:$2 sm:$0xff]
        %961 = vrot.lane.b32.xlu0 %v959, 32
        %v962 = vpop.permute.xlu0 %961
        %v964 = vsel %vm663, %v958, %v962
        %v965 = vsel %vm342, %v964, 0.0
        %966 = vadd.xlane.f32.xlu0 %v965
        %v967 = vpop.xlane.xlu0 %966
        %v968 = vmul.f32 %v964, %v964
        %v969 = vsel %vm342, %v968, 0.0
        %970 = vadd.xlane.f32.xlu0 %v969
        %v971 = vpop.xlane.xlu0 %970
        %v972 = vmul.f32 %v967, 0.015625
        %v973 = vmul.f32 %v971, 0.015625
        %v974 = vmul.f32 %v972, %v972
        %v975 = vsub.f32 %v973, %v974
        %v976 = vadd.f32 %v975, 1e-05
        %v977 = vrsqrt.pop %v976
        %v978 = vmul.f32 %v977, %v976
        %v979 = vmul.f32 %v978, %v977
        %v980 = vmul.f32 0.5, %v979
        %v981 = vsub.f32 1.5, %v980
        %v982 = vmul.f32 %v977, %v981
        %vm983 = vweird.f32 %v976
        %vm984 = vweird.f32 %v977
        %vm985 = vmor %vm983, %vm984
        %v986 = vsel %vm985, %v977, %v982
        %v987 = vsub.f32 %v964, %v972
        %v988 = vmul.f32 %v987, %v986
        %v989 = vpack.c.bf16 %v988, %v988
        %v990 = vld [vmem:[%s7] sm:$0xf]
        %v991 = vld [vmem:[%s7 + $0x4] sm:$0xf]
        %v992 = vld [vmem:[%s7 + $0x8] sm:$0xf]
        %v993 = vld [vmem:[%s7 + $0xc] sm:$0xf]
        %v994 = vld [vmem:[%s7 + $0x10] sm:$0xf]
        %v995 = vld [vmem:[%s7 + $0x14] sm:$0xf]
        %v996 = vld [vmem:[%s7 + $0x18] sm:$0xf]
        %v997 = vld [vmem:[%s7 + $0x1c] sm:$0xf]
        %v998 = vld [vmem:[%s8] sm:$0x1]
        %v1000 = vperm.slane %v998, 0
        %v1010 = vunpack.c.l.b16 %v990
        %v1011 = vunpack.c.l.b16 %v991
        %v1012 = vunpack.c.l.b16 %v992
        %v1013 = vunpack.c.l.b16 %v993
        %v1014 = vunpack.c.l.b16 %v994
        %v1015 = vunpack.c.l.b16 %v995
        %v1016 = vunpack.c.l.b16 %v996
        %v1017 = vunpack.c.l.b16 %v997
        %v1018 = vpack.c.b16 %v1011, %v1010
        %v1019 = vpack.c.b16 %v1013, %v1012
        %v1020 = vpack.c.b16 %v1015, %v1014
        %v1021 = vpack.c.b16 %v1017, %v1016
        %v1027 = vsel %vm342, %v989, 0
        %1029 = vmatpush.bf16.msra.mxu0 0
        %1030 = vmatpush.bf16.msra.mxu0 0
        %1031 = vmatpush.bf16.msra.mxu0 0
        %1032 = vmatpush.bf16.msra.mxu0 0
        %1033 = vmatpush.bf16.msra.mxu0 %v1021
        %1034 = vmatpush.bf16.msra.mxu0 %v1020
        %1035 = vmatpush.bf16.msra.mxu0 %v1019
        %1036 = vmatpush.bf16.msra.mxu0 %v1018
        %1037 = vmatmul.bf16.gmra.mxu0 %v1027
        %v1038 = vpop.f32.mrf.mxu0
        %v1039 = vadd.f32 %v1000, %v1038
        %v1040 = vpop.f32.mrf.mxu0
        %1041 = vdwg.mxu0
        %v1042 = vmax.f32 %v1039, 0.0
        %1043 = vst.msk [vmem:[%s326] sm:$0xff] %vm663, %v1042
        %s1044 = sand.u32 %s225, 1
        %s1045 = scalar_lea.sflag [#allocation5], %s1044
        %s1046 = sand.u32 %s225, 1
        %s1047 = smul.addr %s1046, 8
        %s1048 = scalar_lea.vmem [#allocation4], %s1047
        // Predicated region
        $region57: #{forward.1} parent=55 // pred_check
          %p1049 = pneg %p235
        $region58: #{forward.1} parent=55 // pred_check_branch
          %1051 = sbr.rel (%p1049) target = $region60
        $region59: #{forward.1} parent=55 // pred_region
          %1053 = vsyncadd %s1045, 0
          %s1054 = smul.addr %s23, 8
          %s1055 = scalar_lea.hbm %s9, %s1054
          %s1057 = sshll.u32 %s1048, 4
          %s1058 = int_to_ptr.vmem [resolvable:$true] %s1057
          %s1059 = sshll.u32 %s1055, 4
          %s1060 = int_to_ptr.hbm [resolvable:$true] %s1059
          %1062 = dma.vmem_to_hbm [thread:$0]  %s1058, 128, %s1060, %s1045
        $region60: #{forward.1} parent=55 // pred_fallthru
          _
      $region56: #{forward.1} parent=5 // pred_fallthru
        _
      %p1063 = scmp.le.s32.totalorder 2, %s18
      // Predicated region
      $region61: #{forward.1} parent=5 // pred_check
        %p1064 = pneg %p1063
      $region62: #{forward.1} parent=5 // pred_check_branch
        %1066 = sbr.rel (%p1064) target = $region64
      $region63: #{forward.1} parent=5 // pred_region
        %s1067 = ssub.s32 %s18, 2
        // Predicated region
        $region65: #{forward.1} parent=63 // pred_check
          %p1068 = pneg %p241
        $region66: #{forward.1} parent=63 // pred_check_branch
          %1070 = sbr.rel (%p1068) target = $region68
        $region67: #{forward.1} parent=63 // pred_region
          %s1071 = sand.u32 %s226, 1
          %s1072 = scalar_lea.sflag [#allocation5], %s1071
          %s1073 = sand.u32 %s226, 1
          %s1074 = smul.addr %s1073, 8
          %s1075 = scalar_lea.vmem [#allocation4], %s1074
          %1077 = dma.done %s1072, 128
        $region68: #{forward.1} parent=63 // pred_fallthru
          _
      $region64: #{forward.1} parent=5 // pred_fallthru
        _
    $region6: #{forward.1} parent=1 // loop_footer
      %s22 = sadd.s32 1, %s18
    $region7: #{forward.1} parent=1 // loop_footer_branch
      %17 = sbr.rel target = $region3
    $region8: #{forward.1} parent=1 // loop_exit
      _
    %1078 = vsyncpa [#allocation5], 1
    %s1079 = scalar_lea.sflag [#allocation5], 1
    %1080 = vsyncpa %s1079, 1

</llo_original>
